<compile_context>
chip_gen: v6e
topology: v6e:2x2x1
jax: 0.10.0
libtpu: 0.0.40
codegen_flags: <defaults>
</compile_context>

<pallas_src>
import functools
import math

import jax
import jax.numpy as jnp
from jax.experimental import pallas as pl
from jax.experimental.pallas import tpu as pltpu


def _label_smoothing_kernel(x_ref, t_ref, o_ref, *, confidence, smooth,
                            log_conf, log_smooth, padding_idx):
    # x_ref: (rb, V) log-probs; t_ref: (rb, 1) int32 targets; o_ref: (1, 8, 128)
    x = x_ref[...].astype(jnp.float32)
    tgt = t_ref[...]                                          # (rb, 1)
    rb, V = x.shape

    col = jax.lax.broadcasted_iota(jnp.int32, (rb, V), 1)     # lane indices
    is_tgt = col == tgt                                       # (rb, V)

    # true_dist values / logs selected from compile-time constants (no EUP log).
    td = jnp.where(is_tgt, jnp.float32(confidence), jnp.float32(smooth))
    log_td = jnp.where(is_tgt, jnp.float32(log_conf), jnp.float32(log_smooth))

    # zero the padding_idx column and any row whose target is padding_idx
    # (this also kills the padded tail rows added by the wrapper).
    zero_mask = (col == padding_idx) | (tgt == padding_idx)
    td = jnp.where(zero_mask, jnp.float32(0.0), td)

    # KLDivLoss(reduction='sum'): entries with true_dist == 0 contribute 0.
    contrib = jnp.where(td > 0.0, td * (log_td - x), jnp.float32(0.0))
    partial = jnp.sum(contrib)

    # Dense, (8,128)-aligned store of the per-tile partial sum.
    o_ref[...] = partial + jnp.zeros(o_ref.shape, dtype=jnp.float32)


def label_smoothing_loss(x, target, tgt_vocab_size, padding_idx,
                         smoothing=0.0, row_block=None):
    """x: (N, V) log-probabilities. target: (N,) int class ids. Returns scalar loss."""
    N, V = x.shape
    assert V == tgt_vocab_size, "x.shape[1] must equal tgt_vocab_size"

    confidence = 1.0 - smoothing
    smooth = smoothing / (tgt_vocab_size - 2)
    log_conf = math.log(confidence) if confidence > 0.0 else 0.0
    log_smooth = math.log(smooth) if smooth > 0.0 else 0.0

    # --- row-block selection: ~2 MiB x tiles, multiple of 8, fits VMEM on all gens ---
    bytes_per_row = V * 4
    target_tile_bytes = 2 * 1024 * 1024
    if row_block is None:
        rb = max(8, min(((target_tile_bytes // bytes_per_row) // 8) * 8, 8192))
    else:
        rb = max(8, (row_block // 8) * 8)
    rows_pad8 = ((N + 7) // 8) * 8
    rb = min(rb, rows_pad8)

    num_tiles = (N + rb - 1) // rb
    rows_padded = num_tiles * rb

    # Pad rows: x with zeros, targets with padding_idx (kernel zeroes those rows).
    xp = x.astype(jnp.float32)
    tp = target.astype(jnp.int32)
    if rows_padded != N:
        xp = jnp.pad(xp, ((0, rows_padded - N), (0, 0)))
        tp = jnp.pad(tp, (0, rows_padded - N), constant_values=padding_idx)
    tp = tp.reshape(rows_padded, 1)

    # Explicit VMEM budget (double-buffered in/out), sized for v7x's 64 MiB too.
    x_tile_bytes = rb * V * 4
    t_tile_bytes = rb * 4
    o_tile_bytes = 8 * 128 * 4
    needed = 2 * (x_tile_bytes + t_tile_bytes + o_tile_bytes) + (4 << 20)
    vmem_limit = int(min(max(needed, 32 << 20), 128 << 20))

    kernel = functools.partial(
        _label_smoothing_kernel,
        confidence=confidence, smooth=smooth,
        log_conf=log_conf, log_smooth=log_smooth,
        padding_idx=padding_idx,
    )

    partials = pl.pallas_call(
        kernel,
        out_shape=jax.ShapeDtypeStruct((num_tiles, 8, 128), jnp.float32),
        grid_spec=pl.GridSpec(
            grid=(num_tiles,),
            in_specs=[
                pl.BlockSpec((rb, V), lambda i: (i, 0)),
                pl.BlockSpec((rb, 1), lambda i: (i, 0)),
            ],
            out_specs=pl.BlockSpec((1, 8, 128), lambda i: (i, 0, 0)),
        ),
        compiler_params=pltpu.CompilerParams(
            dimension_semantics=("parallel",),   # row axis shards across v7x's 2 TCs
            vmem_limit_bytes=vmem_limit,
        ),
    )(xp, tp)

    # Sum per-tile partials (tiny reduction done in the XLA wrapper).
    return jnp.sum(partials[:, 0, 0])


if __name__ == "__main__":
    key = jax.random.PRNGKey(0)
    batch, seq, vocab = 2, 8, 128
    padding_idx = 0
    smoothing = 0.1
    N = batch * seq

    k1, k2 = jax.random.split(key)
    logits = jax.random.normal(k1, (N, vocab), dtype=jnp.float32)
    x = jax.nn.log_softmax(logits, axis=-1)                 # KLDivLoss expects log-probs
    target = jax.random.randint(k2, (N,), 0, vocab, dtype=jnp.int32)
    # force a couple of padding targets to exercise the row-masking path
    target = target.at[0].set(padding_idx).at[5].set(padding_idx)

    loss = label_smoothing_loss(x, target, vocab, padding_idx, smoothing)
    loss = jax.block_until_ready(loss)

    # --- reference in plain JAX, replicating the PyTorch module exactly ---
    confidence = 1.0 - smoothing
    smooth = smoothing / (vocab - 2)
    true_dist = jnp.full((N, vocab), smooth, dtype=jnp.float32)
    true_dist = true_dist.at[jnp.arange(N), target].set(confidence)
    true_dist = true_dist.at[:, padding_idx].set(0.0)
    true_dist = jnp.where((target == padding_idx)[:, None], 0.0, true_dist)
    safe_td = jnp.where(true_dist > 0, true_dist, 1.0)
    ref = jnp.sum(jnp.where(true_dist > 0,
                            true_dist * (jnp.log(safe_td) - x), 0.0))

    assert jnp.allclose(loss, ref, atol=1e-4, rtol=1e-4), (
        f"mismatch: kernel={float(loss)} ref={float(ref)}")

    # TODO(synk): the module also stashes `self.true_dist` as a side effect; only the
    # scalar loss (the forward return value) is produced here.
    print("KERNEL_OK")
</pallas_src>

<mosaic_0001>
module attributes {stable_mosaic.version = 11 : i64} {
  func.func @_label_smoothing_kernel(%arg0: i32, %arg1: memref<16x128xf32, #tpu.memory_space<vmem>>, %arg2: memref<16x1xi32, #tpu.memory_space<vmem>>, %arg3: memref<1x8x128xf32, #tpu.memory_space<vmem>>) attributes {dimension_semantics = [#tpu.dimension_semantics<parallel>], iteration_bounds = array<i64: 1>, scalar_prefetch = 0 : i64, scratch_operands = 0 : i64, tpu.core_type = #tpu.core_type<tc>, window_params = [{transform_indices = @transform_0, window_bounds = array<i64: 16, 128>}, {transform_indices = @transform_1, window_bounds = array<i64: 16, 1>}, {transform_indices = @transform_2, window_bounds = array<i64: 1, 8, 128>}]} {
    %c0 = arith.constant 0 : index
    %c0_0 = arith.constant 0 : index
    %0 = vector.load %arg1[%c0, %c0_0] : memref<16x128xf32, #tpu.memory_space<vmem>>, vector<16x128xf32>
    %c0_1 = arith.constant 0 : index
    %c0_2 = arith.constant 0 : index
    %1 = vector.load %arg2[%c0_1, %c0_2] : memref<16x1xi32, #tpu.memory_space<vmem>>, vector<16x1xi32>
    %2 = tpu.iota {dimensions = array<i32: 1>} : vector<16x128xi32>
    %3 = vector.broadcast %1 : vector<16x1xi32> to vector<16x128xi32>
    %4 = arith.cmpi eq, %2, %3 : vector<16x128xi32>
    %cst = arith.constant 0.899999976 : f32
    %cst_3 = arith.constant 7.93650805E-4 : f32
    %5 = vector.broadcast %cst : f32 to vector<16x128xf32>
    %6 = vector.broadcast %cst_3 : f32 to vector<16x128xf32>
    %7 = arith.select %4, %5, %6 : vector<16x128xi1>, vector<16x128xf32>
    %cst_4 = arith.constant -0.105360515 : f32
    %cst_5 = arith.constant -7.1388669 : f32
    %8 = vector.broadcast %cst_4 : f32 to vector<16x128xf32>
    %9 = vector.broadcast %cst_5 : f32 to vector<16x128xf32>
    %10 = arith.select %4, %8, %9 : vector<16x128xi1>, vector<16x128xf32>
    %c0_i32 = arith.constant 0 : i32
    %11 = vector.broadcast %c0_i32 : i32 to vector<16x128xi32>
    %12 = arith.cmpi eq, %2, %11 : vector<16x128xi32>
    %c0_i32_6 = arith.constant 0 : i32
    %13 = vector.broadcast %c0_i32_6 : i32 to vector<16x1xi32>
    %14 = arith.cmpi eq, %1, %13 : vector<16x1xi32>
    %15 = vector.broadcast %14 : vector<16x1xi1> to vector<16x128xi1>
    %16 = arith.ori %12, %15 : vector<16x128xi1>
    %cst_7 = arith.constant 0.000000e+00 : f32
    %17 = vector.broadcast %cst_7 : f32 to vector<16x128xf32>
    %18 = arith.select %16, %17, %7 : vector<16x128xi1>, vector<16x128xf32>
    %cst_8 = arith.constant 0.000000e+00 : f32
    %19 = vector.broadcast %cst_8 : f32 to vector<16x128xf32>
    %20 = arith.cmpf ogt, %18, %19 : vector<16x128xf32>
    %21 = arith.subf %10, %0 : vector<16x128xf32>
    %22 = arith.mulf %18, %21 : vector<16x128xf32>
    %cst_9 = arith.constant 0.000000e+00 : f32
    %23 = vector.broadcast %cst_9 : f32 to vector<16x128xf32>
    %24 = arith.select %20, %22, %23 : vector<16x128xi1>, vector<16x128xf32>
    %25 = vector.shape_cast %24 : vector<16x128xf32> to vector<1x16x128xf32>
    %cst_10 = arith.constant dense<0.000000e+00> : vector<1xf32>
    %26 = vector.multi_reduction <add>, %25, %cst_10 [1, 2] : vector<1x16x128xf32> to vector<1xf32>
    %27 = vector.shape_cast %26 : vector<1xf32> to vector<1x1x1xf32>
    %28 = vector.extract %27[0, 0, 0] : f32 from vector<1x1x1xf32>
    %cst_11 = arith.constant 0.000000e+00 : f32
    %29 = vector.broadcast %cst_11 : f32 to vector<1x8x128xf32>
    %30 = vector.broadcast %28 : f32 to vector<1x8x128xf32>
    %31 = arith.addf %30, %29 : vector<1x8x128xf32>
    %c0_12 = arith.constant 0 : index
    %c0_13 = arith.constant 0 : index
    %c0_14 = arith.constant 0 : index
    %32 = vector.load %arg3[%c0_12, %c0_13, %c0_14] : memref<1x8x128xf32, #tpu.memory_space<vmem>>, vector<1x8x128xf32>
    tpu.vector_store %arg3[%c0_12, %c0_13, %c0_14], %31 {strides = array<i32>} : memref<1x8x128xf32, #tpu.memory_space<vmem>>, vector<1x8x128xf32>,
    return
  }
  func.func @transform_0(%arg0: i32) -> (i32, i32) {
    %c0_i32 = arith.constant 0 : i32
    %c0_i32_0 = arith.constant 0 : i32
    return %arg0, %c0_i32 : i32, i32
  }
  func.func @transform_1(%arg0: i32) -> (i32, i32) {
    %c0_i32 = arith.constant 0 : i32
    %c0_i32_0 = arith.constant 0 : i32
    return %arg0, %c0_i32 : i32, i32
  }
  func.func @transform_2(%arg0: i32) -> (i32, i32, i32) {
    %c0_i32 = arith.constant 0 : i32
    %c0_i32_0 = arith.constant 0 : i32
    %c0_i32_1 = arith.constant 0 : i32
    return %arg0, %c0_i32, %c0_i32_0 : i32, i32, i32
  }
}

</mosaic_0001>

<llo_original>
// kernel: tpu_custom_call.1
$region0: #{tpu_custom_call.1}
  #allocation0 [shape = 'u32[]', space=smem, size = 0x4, offset = 0x4, fixed_abs, tag = 'smem constant byte address 0x4 - core index']
  #allocation1 [shape = 'u32[144,128]{1,0:T(1,128)}', space=vmem, size = 0x12000, scoped, tag = 'internal scratch']
  %s0 = inlined_call_operand.vmem [shape: f32[16,128], index: 0, kind: input, shape index: {}]
  %s1 = inlined_call_operand.vmem [shape: s32[16,1], index: 1, kind: input, shape index: {}]
  %s2 = inlined_call_operand.hbm [shape: f32[1,8,128], index: 2, kind: output, shape index: {}]
  %s3 = sld [smem:[#allocation0]]
  $region18: #{tpu_custom_call.1} parent=0
    _
  %s5 = ssub.s32 1, %s3
  %s6 = scalar_select 0, %s5, %s3
  $region1: #{tpu_custom_call.1} parent=0
    #allocation2 [shape = 'u8[4096]{0}', space=vmem, size = 0x1000, scoped, tag = 'output window, operand 0, single buffered']
    #allocation3 [shape = 's32[1]{0}', space=sflag, size = 0x4, scoped, tag = 'scoped memory for tpu_custom_call.1']
    %7 = vsyncpa [#allocation3], 0
    // Predicated region
    $region2: #{tpu_custom_call.1} parent=1 // pred_check
      _
    $region3: #{tpu_custom_call.1} parent=1 // pred_check_branch
      %9 = sbr.rel (0) target = $region5
    $region4: #{tpu_custom_call.1} parent=1 // pred_region
      _
    $region5: #{tpu_custom_call.1} parent=1 // pred_fallthru
      _
    // Predicated region
    $region6: #{tpu_custom_call.1} parent=1 // pred_check
      _
    $region7: #{tpu_custom_call.1} parent=1 // pred_check_branch
      %11 = sbr.rel (0) target = $region9
    $region8: #{tpu_custom_call.1} parent=1 // pred_region
      _
    $region9: #{tpu_custom_call.1} parent=1 // pred_fallthru
      _
    %v12 = vld [vmem:[%s0] sm:$0xff]
    %v13 = vld [vmem:[%s0 + $0x8] sm:$0xff]
    %v14 = vld [vmem:[%s1] sm:$0xff]
    %v15 = vld [vmem:[%s1 + $0x8] sm:$0xff]
    %v16 = vlaneseq
    %v17 = vand.u32 %v16, 127
    %18 = vset.pattern.permute.xlu0 0
    %19 = vperm.xlu0 %18, %v14
    %v20 = vpop.permute.xlu0 %19
    %21 = vset.pattern.permute.xlu0 0
    %22 = vperm.xlu0 %21, %v15
    %v23 = vpop.permute.xlu0 %22
    %vm24 = vcmp.eq.s32.totalorder %v17, %v20
    %vm25 = vcmp.eq.s32.totalorder %v17, %v23
    %v26 = vsel %vm24, 0.9, 0.0007936508
    %v27 = vsel %vm25, 0.9, 0.0007936508
    %v28 = vsel %vm24, -0.105360515, -7.138867
    %v29 = vsel %vm25, -0.105360515, -7.138867
    %vm30 = vcmp.eq.s32.totalorder %v17, 0
    %vm31 = vcmp.eq.s32.totalorder %v14, 0
    %vm32 = vcmp.eq.s32.totalorder %v15, 0
    %v33 = vsel %vm31, 1, 0
    %v34 = vsel %vm32, 1, 0
    %35 = vset.pattern.permute.xlu0 0
    %36 = vperm.xlu0 %35, %v33
    %v37 = vpop.permute.xlu0 %36
    %38 = vset.pattern.permute.xlu0 0
    %39 = vperm.xlu0 %38, %v34
    %v40 = vpop.permute.xlu0 %39
    %vm41 = vcmp.eq.s32.totalorder %v37, 1
    %vm42 = vcmp.eq.s32.totalorder %v40, 1
    %vm43 = vmor %vm30, %vm41
    %vm44 = vmor %vm30, %vm42
    %v45 = vsel %vm43, 0.0, %v26
    %v46 = vsel %vm44, 0.0, %v27
    %vm47 = vcmp.gt.f32.partialorder %v45, 0.0
    %vm48 = vcmp.gt.f32.partialorder %v46, 0.0
    %v49 = vsub.f32 %v28, %v12
    %v50 = vsub.f32 %v29, %v13
    %v51 = vmul.f32 %v45, %v49
    %v52 = vmul.f32 %v46, %v50
    %v53 = vsel %vm47, %v51, 0.0
    %v54 = vsel %vm48, %v52, 0.0
    %v55 = vadd.f32 %v53, %v54
    %56 = vadd.xlane.f32.xlu0 %v55
    %v57 = vpop.xlane.xlu0 %56
    %v58 = vrot.slane %v57, 4
    %v59 = vadd.f32 %v57, %v58
    %v60 = vrot.slane %v59, 2
    %v61 = vadd.f32 %v59, %v60
    %v62 = vrot.slane %v61, 1
    %v63 = vadd.f32 %v61, %v62
    %s64 = vtos %v63
    %v65 = vstv %s64
    %v66 = vadd.f32 %v65, 0.0
    %67 = vst [vmem:[#allocation2] sm:$0xff] %v66
    // Predicated region
    $region10: #{tpu_custom_call.1} parent=1 // pred_check
      _
    $region11: #{tpu_custom_call.1} parent=1 // pred_check_branch
      %69 = sbr.rel (0) target = $region13
    $region12: #{tpu_custom_call.1} parent=1 // pred_region
      %s71 = ssub.s32 128, 128
      %72 = vsyncadd [#allocation3], %s71
      %s74 = sshll.u32 [#allocation2], 4
      %s75 = int_to_ptr.vmem [resolvable:$true] %s74
      %77 = dma.vmem_to_hbm [thread:$0]  %s75, 128, %s2, [#allocation3]
    $region13: #{tpu_custom_call.1} parent=1 // pred_fallthru
      _
    // Predicated region
    $region14: #{tpu_custom_call.1} parent=1 // pred_check
      _
    $region15: #{tpu_custom_call.1} parent=1 // pred_check_branch
      %79 = sbr.rel (0) target = $region17
    $region16: #{tpu_custom_call.1} parent=1 // pred_region
      %80 = dma.done [#allocation3], 128
    $region17: #{tpu_custom_call.1} parent=1 // pred_fallthru
      _
    %81 = vsyncpa [#allocation3], 1

</llo_original>
